<compile_context>
chip_gen: v7x
topology: tpu7x:2x2x1
jax: 0.10.0
libtpu: 0.0.40
codegen_flags: <defaults>
</compile_context>

<pallas_src>
import functools

import jax
import jax.numpy as jnp
from jax.experimental import pallas as pl
from jax.experimental.pallas import tpu as pltpu


def _elu(x):
    # F.elu(alpha=1.0), safe form: exp only sees non-positive inputs.
    return jnp.where(x > 0, x, jnp.exp(jnp.minimum(x, 0.0)) - 1.0)


def qnetwork_kernel(z_ref, w1_ref, w2_ref, w3_ref, b_ref, out_ref, *,
                    hidden2, action_space):
    # Biases read exactly once (f32).  Row 0 -> layer 1, row 1 -> layer 2,
    # row 2 -> layer 3 (with the dueling combine already folded in).
    b = b_ref[...]
    b1 = b[0:1, :hidden2]
    b2 = b[1:2, :hidden2]
    b3 = b[2:3, :action_space]

    cdt = w1_ref.dtype  # MXU operand dtype (bf16 on the default fast path)

    # Fused dueling MLP: 3 matmuls cover both branches; f32 accumulation.
    h = jnp.dot(z_ref[...], w1_ref[...], preferred_element_type=jnp.float32) + b1
    h = _elu(h)
    h = jnp.dot(h.astype(cdt), w2_ref[...],
                preferred_element_type=jnp.float32) + b2
    h = _elu(h)
    # Last matmul already produces adv - mean(adv) + val: no epilogue work.
    y = jnp.dot(h.astype(cdt), w3_ref[...],
                preferred_element_type=jnp.float32) + b3
    out_ref[...] = y.astype(out_ref.dtype)


def pack_params(params, compute_dtype=jnp.bfloat16):
    """Fuse adv/val branch weights into 3 packed matrices and fold the dueling
    combine into the last one.  Returns (w1, w2, w3, bias_pack); weights in
    `compute_dtype`, biases (packed as (3, max(2H, A))) in float32."""
    def block_diag(a, b):
        m1, n1 = a.shape
        m2, n2 = b.shape
        top = jnp.concatenate([a, jnp.zeros((m1, n2), a.dtype)], axis=1)
        bot = jnp.concatenate([jnp.zeros((m2, n1), b.dtype), b], axis=1)
        return jnp.concatenate([top, bot], axis=0)

    A = params["aw3"].shape[1]

    w1 = jnp.concatenate([params["aw1"], params["vw1"]], axis=1)      # (Z, 2H)
    b1 = jnp.concatenate([params["ab1"], params["vb1"]], axis=1)      # (1, 2H)
    w2 = block_diag(params["aw2"], params["vw2"])                      # (2H, 2H)
    b2 = jnp.concatenate([params["ab2"], params["vb2"]], axis=1)      # (1, 2H)
    w3p = block_diag(params["aw3"], params["vw3"])                     # (2H, A+1)
    b3p = jnp.concatenate([params["ab3"], params["vb3"]], axis=1)     # (1, A+1)

    # Dueling combine as a linear map C (A+1, A):
    #   [adv | val] @ C = adv - mean(adv) + val
    C = jnp.concatenate(
        [jnp.eye(A, dtype=jnp.float32) - 1.0 / A,
         jnp.ones((1, A), dtype=jnp.float32)],
        axis=0)
    w3 = w3p @ C                                                       # (2H, A)
    b3 = b3p @ C                                                       # (1, A)

    # Pack the three bias rows into one array -> fewer inputs / DMAs.
    hidden2 = w2.shape[0]
    width = max(hidden2, A)

    def pad_row(x):
        return jnp.pad(x, ((0, 0), (0, width - x.shape[1])))

    bias = jnp.concatenate([pad_row(b1), pad_row(b2), pad_row(b3)], axis=0)

    return (w1.astype(compute_dtype), w2.astype(compute_dtype),
            w3.astype(compute_dtype), bias.astype(jnp.float32))


def _num_tensorcores_per_chip():
    """Best-effort detection: v7x has 2 TensorCores/chip, v5e/v6e have 1."""
    try:
        kind = (getattr(jax.devices()[0], "device_kind", "") or "").lower()
        if "v7" in kind:
            return 2
    except Exception:
        pass
    return 1


def _choose_tile_b(batch, max_tile_b, num_cores):
    def cdiv(a, b):
        return -(-a // b)

    def round_up(x, m):
        return ((x + m - 1) // m) * m

    max_tile_b = max(8, (max_tile_b // 8) * 8)
    if num_cores >= 2 and batch > 256:
        # Even number of >= 2 tiles so both TensorCores stay busy.
        ntiles = 2
        while round_up(cdiv(batch, ntiles), 8) > max_tile_b:
            ntiles += 2
        return round_up(cdiv(batch, ntiles), 8)
    # Single TensorCore: fewest, largest tiles (extra grid steps are pure
    # serial overhead).  tb == batch makes the block equal the full array,
    # which is always a legal block shape.
    return batch if batch <= max_tile_b else max_tile_b


def qnetwork_forward(z, params, *, max_tile_b=4096,
                     compute_dtype=jnp.bfloat16):
    """z: (B, z_size) float32. params: dict of per-branch transposed weights."""
    B, z_size = z.shape
    action_space = params["aw3"].shape[1]
    hidden2 = params["aw2"].shape[1] + params["vw2"].shape[1]

    w1, w2, w3, bias = pack_params(params, compute_dtype)
    z_c = z.astype(compute_dtype)

    tb = _choose_tile_b(B, max_tile_b, _num_tensorcores_per_chip())
    grid = (pl.cdiv(B, tb),)

    # Packed weights / biases stay resident (constant index_map -> DMA'd once,
    # reused across all batch tiles).
    def resident(arr):
        return pl.BlockSpec(arr.shape, lambda i: (0, 0))

    kernel = functools.partial(qnetwork_kernel, hidden2=hidden2,
                               action_space=action_space)

    return pl.pallas_call(
        kernel,
        out_shape=jax.ShapeDtypeStruct((B, action_space), jnp.float32),
        grid_spec=pltpu.PrefetchScalarGridSpec(
            num_scalar_prefetch=0,
            grid=grid,
            in_specs=[
                pl.BlockSpec((tb, z_size), lambda i: (i, 0)),
                resident(w1), resident(w2), resident(w3), resident(bias),
            ],
            out_specs=pl.BlockSpec((tb, action_space), lambda i: (i, 0)),
        ),
        compiler_params=pltpu.CompilerParams(
            dimension_semantics=("parallel",),
        ),
    )(z_c, w1, w2, w3, bias)


def init_params(key, z_size, hidden_size, action_space):
    """PyTorch-Linear-style init (U[-1/sqrt(fan_in), 1/sqrt(fan_in)]).
    Weights stored transposed: (in_features, out_features); biases (1, out)."""
    def linear(k, fan_in, fan_out):
        kw, kb = jax.random.split(k)
        bound = 1.0 / jnp.sqrt(fan_in)
        w = jax.random.uniform(kw, (fan_in, fan_out), jnp.float32, -bound, bound)
        b = jax.random.uniform(kb, (1, fan_out), jnp.float32, -bound, bound)
        return w, b

    keys = jax.random.split(key, 6)
    aw1, ab1 = linear(keys[0], z_size, hidden_size)
    aw2, ab2 = linear(keys[1], hidden_size, hidden_size)
    aw3, ab3 = linear(keys[2], hidden_size, action_space)
    vw1, vb1 = linear(keys[3], z_size, hidden_size)
    vw2, vb2 = linear(keys[4], hidden_size, hidden_size)
    vw3, vb3 = linear(keys[5], hidden_size, 1)
    return dict(aw1=aw1, ab1=ab1, aw2=aw2, ab2=ab2, aw3=aw3, ab3=ab3,
                vw1=vw1, vb1=vb1, vw2=vw2, vb2=vb2, vw3=vw3, vb3=vb3)


def qnetwork_reference(z, p):
    """Pure-JAX reference matching the PyTorch forward (unfused branches)."""
    def elu(x):
        return jnp.where(x > 0, x, jnp.exp(jnp.minimum(x, 0.0)) - 1.0)
    t = elu(z @ p["aw1"] + p["ab1"])
    t = elu(t @ p["aw2"] + p["ab2"])
    adv = t @ p["aw3"] + p["ab3"]
    s = elu(z @ p["vw1"] + p["vb1"])
    s = elu(s @ p["vw2"] + p["vb2"])
    val = s @ p["vw3"] + p["vb3"]
    return adv - adv.mean(axis=1, keepdims=True) + val


if __name__ == "__main__":
    B, Z_SIZE, HIDDEN, ACTIONS = 8, 32, 32, 8

    key = jax.random.PRNGKey(0)
    k_z, k_p = jax.random.split(key)
    z = jax.random.normal(k_z, (B, Z_SIZE), dtype=jnp.float32)
    params = init_params(k_p, Z_SIZE, HIDDEN, ACTIONS)

    ref = qnetwork_reference(z, params)

    # f32 operands: tight check that the fused / combine-folded math is exact.
    out_f32 = jax.block_until_ready(
        qnetwork_forward(z, params, compute_dtype=jnp.float32))
    assert out_f32.shape == (B, ACTIONS)
    assert jnp.allclose(out_f32, ref, atol=1e-4, rtol=1e-4), \
        "Pallas f32 output mismatch vs reference"

    # Default fast path (bf16 operands, f32 accumulation): looser tolerance.
    out_bf16 = jax.block_until_ready(qnetwork_forward(z, params))
    assert out_bf16.shape == (B, ACTIONS)
    assert jnp.allclose(out_bf16, ref, atol=5e-2, rtol=5e-2), \
        "Pallas bf16 output mismatch vs reference"

    print("KERNEL_OK")
</pallas_src>

<mosaic_0001>
module attributes {stable_mosaic.version = 11 : i64} {
  func.func @qnetwork_kernel(%arg0: i32, %arg1: memref<8x32xf32, #tpu.memory_space<vmem>>, %arg2: memref<32x64xf32, #tpu.memory_space<vmem>>, %arg3: memref<64x64xf32, #tpu.memory_space<vmem>>, %arg4: memref<64x8xf32, #tpu.memory_space<vmem>>, %arg5: memref<3x64xf32, #tpu.memory_space<vmem>>, %arg6: memref<8x8xf32, #tpu.memory_space<vmem>>) attributes {dimension_semantics = [#tpu.dimension_semantics<parallel>], iteration_bounds = array<i64: 1>, scalar_prefetch = 0 : i64, scratch_operands = 0 : i64, tpu.core_type = #tpu.core_type<tc>, window_params = [{transform_indices = @transform_0, window_bounds = array<i64: 8, 32>}, {pipeline_mode = #tpu.pipeline_mode<synchronous>, transform_indices = @transform_1, window_bounds = array<i64: 32, 64>}, {pipeline_mode = #tpu.pipeline_mode<synchronous>, transform_indices = @transform_2, window_bounds = array<i64: 64, 64>}, {pipeline_mode = #tpu.pipeline_mode<synchronous>, transform_indices = @transform_3, window_bounds = array<i64: 64, 8>}, {pipeline_mode = #tpu.pipeline_mode<synchronous>, transform_indices = @transform_4, window_bounds = array<i64: 3, 64>}, {transform_indices = @transform_5, window_bounds = array<i64: 8, 8>}]} {
    %c0 = arith.constant 0 : index
    %c0_0 = arith.constant 0 : index
    %0 = vector.load %arg5[%c0, %c0_0] : memref<3x64xf32, #tpu.memory_space<vmem>>, vector<3x64xf32>
    %1 = vector.extract_strided_slice %0 {offsets = [0, 0], sizes = [1, 64], strides = [1, 1]} : vector<3x64xf32> to vector<1x64xf32>
    %2 = vector.extract_strided_slice %0 {offsets = [1, 0], sizes = [1, 64], strides = [1, 1]} : vector<3x64xf32> to vector<1x64xf32>
    %3 = vector.extract_strided_slice %0 {offsets = [2, 0], sizes = [1, 8], strides = [1, 1]} : vector<3x64xf32> to vector<1x8xf32>
    %c0_1 = arith.constant 0 : index
    %c0_2 = arith.constant 0 : index
    %4 = vector.load %arg1[%c0_1, %c0_2] : memref<8x32xf32, #tpu.memory_space<vmem>>, vector<8x32xf32>
    %c0_3 = arith.constant 0 : index
    %c0_4 = arith.constant 0 : index
    %5 = vector.load %arg2[%c0_3, %c0_4] : memref<32x64xf32, #tpu.memory_space<vmem>>, vector<32x64xf32>
    %cst = arith.constant dense<0.000000e+00> : vector<8x64xf32>
    %6 = tpu.matmul %4, %5, %cst {dimension_numbers = #tpu.dot_dimension_numbers<[1], [0], [0], [1], [0, 0, 1, 1], [], []>} : vector<8x32xf32>, vector<32x64xf32>, vector<8x64xf32> -> vector<8x64xf32>
    %7 = vector.broadcast %1 : vector<1x64xf32> to vector<8x64xf32>
    %8 = arith.addf %6, %7 : vector<8x64xf32>
    %cst_5 = arith.constant 0.000000e+00 : f32
    %9 = vector.broadcast %cst_5 : f32 to vector<8x64xf32>
    %10 = arith.cmpf ogt, %8, %9 : vector<8x64xf32>
    %cst_6 = arith.constant 0.000000e+00 : f32
    %11 = vector.broadcast %cst_6 : f32 to vector<8x64xf32>
    %12 = arith.minimumf %8, %11 : vector<8x64xf32>
    %13 = math.exp %12 : vector<8x64xf32>
    %cst_7 = arith.constant 1.000000e+00 : f32
    %14 = vector.broadcast %cst_7 : f32 to vector<8x64xf32>
    %15 = arith.subf %13, %14 : vector<8x64xf32>
    %16 = arith.select %10, %8, %15 : vector<8x64xi1>, vector<8x64xf32>
    %c0_8 = arith.constant 0 : index
    %c0_9 = arith.constant 0 : index
    %17 = vector.load %arg3[%c0_8, %c0_9] : memref<64x64xf32, #tpu.memory_space<vmem>>, vector<64x64xf32>
    %cst_10 = arith.constant dense<0.000000e+00> : vector<8x64xf32>
    %18 = tpu.matmul %16, %17, %cst_10 {dimension_numbers = #tpu.dot_dimension_numbers<[1], [0], [0], [1], [0, 0, 1, 1], [], []>} : vector<8x64xf32>, vector<64x64xf32>, vector<8x64xf32> -> vector<8x64xf32>
    %19 = vector.broadcast %2 : vector<1x64xf32> to vector<8x64xf32>
    %20 = arith.addf %18, %19 : vector<8x64xf32>
    %cst_11 = arith.constant 0.000000e+00 : f32
    %21 = vector.broadcast %cst_11 : f32 to vector<8x64xf32>
    %22 = arith.cmpf ogt, %20, %21 : vector<8x64xf32>
    %cst_12 = arith.constant 0.000000e+00 : f32
    %23 = vector.broadcast %cst_12 : f32 to vector<8x64xf32>
    %24 = arith.minimumf %20, %23 : vector<8x64xf32>
    %25 = math.exp %24 : vector<8x64xf32>
    %cst_13 = arith.constant 1.000000e+00 : f32
    %26 = vector.broadcast %cst_13 : f32 to vector<8x64xf32>
    %27 = arith.subf %25, %26 : vector<8x64xf32>
    %28 = arith.select %22, %20, %27 : vector<8x64xi1>, vector<8x64xf32>
    %c0_14 = arith.constant 0 : index
    %c0_15 = arith.constant 0 : index
    %29 = vector.load %arg4[%c0_14, %c0_15] : memref<64x8xf32, #tpu.memory_space<vmem>>, vector<64x8xf32>
    %cst_16 = arith.constant dense<0.000000e+00> : vector<8x8xf32>
    %30 = tpu.matmul %28, %29, %cst_16 {dimension_numbers = #tpu.dot_dimension_numbers<[1], [0], [0], [1], [0, 0, 1, 1], [], []>} : vector<8x64xf32>, vector<64x8xf32>, vector<8x8xf32> -> vector<8x8xf32>
    %31 = vector.broadcast %3 : vector<1x8xf32> to vector<8x8xf32>
    %32 = arith.addf %30, %31 : vector<8x8xf32>
    %c0_17 = arith.constant 0 : index
    %c0_18 = arith.constant 0 : index
    %33 = vector.load %arg6[%c0_17, %c0_18] : memref<8x8xf32, #tpu.memory_space<vmem>>, vector<8x8xf32>
    tpu.vector_store %arg6[%c0_17, %c0_18], %32 {strides = array<i32>} : memref<8x8xf32, #tpu.memory_space<vmem>>, vector<8x8xf32>,
    return
  }
  func.func @transform_0(%arg0: i32) -> (i32, i32) {
    %c0_i32 = arith.constant 0 : i32
    %c0_i32_0 = arith.constant 0 : i32
    return %arg0, %c0_i32 : i32, i32
  }
  func.func @transform_1(%arg0: i32) -> (i32, i32) {
    %c0_i32 = arith.constant 0 : i32
    %c0_i32_0 = arith.constant 0 : i32
    %c0_i32_1 = arith.constant 0 : i32
    return %c0_i32, %c0_i32_0 : i32, i32
  }
  func.func @transform_2(%arg0: i32) -> (i32, i32) {
    %c0_i32 = arith.constant 0 : i32
    %c0_i32_0 = arith.constant 0 : i32
    %c0_i32_1 = arith.constant 0 : i32
    return %c0_i32, %c0_i32_0 : i32, i32
  }
  func.func @transform_3(%arg0: i32) -> (i32, i32) {
    %c0_i32 = arith.constant 0 : i32
    %c0_i32_0 = arith.constant 0 : i32
    %c0_i32_1 = arith.constant 0 : i32
    return %c0_i32, %c0_i32_0 : i32, i32
  }
  func.func @transform_4(%arg0: i32) -> (i32, i32) {
    %c0_i32 = arith.constant 0 : i32
    %c0_i32_0 = arith.constant 0 : i32
    %c0_i32_1 = arith.constant 0 : i32
    return %c0_i32, %c0_i32_0 : i32, i32
  }
  func.func @transform_5(%arg0: i32) -> (i32, i32) {
    %c0_i32 = arith.constant 0 : i32
    %c0_i32_0 = arith.constant 0 : i32
    return %arg0, %c0_i32 : i32, i32
  }
}

</mosaic_0001>

<llo_original>
// kernel: tpu_custom_call.1
$region0: #{tpu_custom_call.1}
  #allocation0 [shape = 'u32[]', space=smem, size = 0x4, offset = 0x4, fixed_abs, tag = 'smem constant byte address 0x4 - core index']
  #allocation1 [shape = 'u32[144,128]{1,0:T(1,128)}', space=vmem, size = 0x12000, scoped, tag = 'internal scratch']
  %s0 = inlined_call_operand.vmem [shape: f32[8,32], index: 0, kind: input, shape index: {}]
  %s1 = inlined_call_operand.hbm [shape: f32[32,64], index: 1, kind: input, shape index: {}]
  %s2 = inlined_call_operand.vmem [shape: f32[64,64], index: 2, kind: input, shape index: {}]
  %s3 = inlined_call_operand.vmem [shape: f32[64,8], index: 3, kind: input, shape index: {}]
  %s4 = inlined_call_operand.vmem [shape: f32[3,64], index: 4, kind: input, shape index: {}]
  %s5 = inlined_call_operand.hbm [shape: f32[8,8], index: 5, kind: output, shape index: {}]
  %s6 = sld [smem:[#allocation0]]
  $region34: #{tpu_custom_call.1} parent=0
    _
  %s8 = ssub.s32 1, %s6
  %s9 = scalar_select 0, %s8, %s6
  $region1: #{tpu_custom_call.1} parent=0
    #allocation2 [shape = 'u8[16384]{0}', space=vmem, size = 0x4000, scoped, tag = 'input window, operand 1, single buffered']
    #allocation3 [shape = 's32[1]{0}', space=sflag, size = 0x4, scoped, tag = 'scoped memory for tpu_custom_call.1']
    #allocation4 [shape = 's32[1]{0}', space=sflag, size = 0x4, scoped, tag = 'scoped memory for tpu_custom_call.1']
    #allocation5 [shape = 'u8[4096]{0}', space=vmem, size = 0x1000, scoped, tag = 'output window, operand 0, single buffered']
    %10 = vsyncpa [#allocation3], 0
    %11 = vsyncpa [#allocation4], 0
    // Predicated region
    $region2: #{tpu_custom_call.1} parent=1 // pred_check
      _
    $region3: #{tpu_custom_call.1} parent=1 // pred_check_branch
      %13 = sbr.rel (0) target = $region5
    $region4: #{tpu_custom_call.1} parent=1 // pred_region
      _
    $region5: #{tpu_custom_call.1} parent=1 // pred_fallthru
      _
    // Predicated region
    $region6: #{tpu_custom_call.1} parent=1 // pred_check
      _
    $region7: #{tpu_custom_call.1} parent=1 // pred_check_branch
      %15 = sbr.rel (0) target = $region9
    $region8: #{tpu_custom_call.1} parent=1 // pred_region
      %s17 = ssub.s32 512, 512
      %18 = vsyncadd [#allocation3], %s17
      %s19 = sshll.u32 [#allocation2], 4
      %s20 = int_to_ptr.vmem [resolvable:$true] %s19
      %25 = dma.hbm_to_vmem [thread:$0]  %s1, 512, %s20, [#allocation3], 128, 128, 8
    $region9: #{tpu_custom_call.1} parent=1 // pred_fallthru
      _
    // Predicated region
    $region10: #{tpu_custom_call.1} parent=1 // pred_check
      _
    $region11: #{tpu_custom_call.1} parent=1 // pred_check_branch
      %27 = sbr.rel (0) target = $region13
    $region12: #{tpu_custom_call.1} parent=1 // pred_region
      _
    $region13: #{tpu_custom_call.1} parent=1 // pred_fallthru
      _
    // Predicated region
    $region14: #{tpu_custom_call.1} parent=1 // pred_check
      _
    $region15: #{tpu_custom_call.1} parent=1 // pred_check_branch
      %29 = sbr.rel (0) target = $region17
    $region16: #{tpu_custom_call.1} parent=1 // pred_region
      _
    $region17: #{tpu_custom_call.1} parent=1 // pred_fallthru
      _
    // Predicated region
    $region18: #{tpu_custom_call.1} parent=1 // pred_check
      _
    $region19: #{tpu_custom_call.1} parent=1 // pred_check_branch
      %31 = sbr.rel (0) target = $region21
    $region20: #{tpu_custom_call.1} parent=1 // pred_region
      _
    $region21: #{tpu_custom_call.1} parent=1 // pred_fallthru
      _
    // Predicated region
    $region22: #{tpu_custom_call.1} parent=1 // pred_check
      _
    $region23: #{tpu_custom_call.1} parent=1 // pred_check_branch
      %33 = sbr.rel (0) target = $region25
    $region24: #{tpu_custom_call.1} parent=1 // pred_region
      %34 = dma.done [#allocation3], 512
    $region25: #{tpu_custom_call.1} parent=1 // pred_fallthru
      _
    %v35 = vld [vmem:[%s4] sm:$0x7]
    %v36 = vld [vmem:[%s0] sm:$0xff]
    %v37 = vld [vmem:[#allocation2] sm:$0xff]
    %v38 = vld [vmem:[#allocation2 + $0x8] sm:$0xff]
    %v39 = vld [vmem:[#allocation2 + $0x10] sm:$0xff]
    %v40 = vld [vmem:[#allocation2 + $0x18] sm:$0xff]
    %v41 = vlaneseq
    %v42 = vshrl.u32 %v41, 7
    %v43 = vsub.s32 0, %v42
    %v44 = vrot.slane %v35, %v43
    %vm45 = vcmask 261120
    %v47 = vsel %vm45, %v36, 0
    %49 = vmatprep.subr.mxu0 0.0
    %50 = vmatpush1.msra.mxu0 %v37
    %51 = vmatprep.subr.mxu0 0.0
    %52 = vmatpush1.msra.mxu0 %v38
    %53 = vmatprep.subr.mxu0 0.0
    %54 = vmatpush1.msra.mxu0 %v39
    %55 = vmatprep.subr.mxu0 0.0
    %56 = vmatpush1.msra.mxu0 %v40
    %57 = vmatprep.subr.mxu0 0.0
    %58 = vmatpush1.msra.mxu0 0.0
    %59 = vmatprep.subr.mxu0 0.0
    %60 = vmatpush1.msra.mxu0 0.0
    %61 = vmatprep.subr.mxu0 0.0
    %62 = vmatpush1.msra.mxu0 0.0
    %63 = vmatprep.subr.mxu0 0.0
    %64 = vmatpush1.msra.mxu0 0.0
    %65 = vmatprep.subr.mxu0 0.0
    %66 = vmatpush1.msra.mxu0 0.0
    %67 = vmatprep.subr.mxu0 0.0
    %68 = vmatpush1.msra.mxu0 0.0
    %69 = vmatprep.subr.mxu0 0.0
    %70 = vmatpush1.msra.mxu0 0.0
    %71 = vmatprep.subr.mxu0 0.0
    %72 = vmatpush1.msra.mxu0 0.0
    %73 = vmatprep.subr.mxu0 0.0
    %74 = vmatpush1.msra.mxu0 0.0
    %75 = vmatprep.subr.mxu0 0.0
    %76 = vmatpush1.msra.mxu0 0.0
    %77 = vmatprep.subr.mxu0 0.0
    %78 = vmatpush1.msra.mxu0 0.0
    %79 = vmatprep.subr.mxu0 0.0
    %80 = vmatpush1.msra.mxu0 0.0
    %81 = vmatprep.subr.mxu0 0.0
    %82 = vmatpush1.msra.mxu0 0.0
    %83 = vmatprep.subr.mxu0 0.0
    %84 = vmatpush1.msra.mxu0 0.0
    %85 = vmatprep.subr.mxu0 0.0
    %86 = vmatpush1.msra.mxu0 0.0
    %87 = vmatprep.subr.mxu0 0.0
    %88 = vmatpush1.msra.mxu0 0.0
    %89 = vmatprep.subr.mxu0 0.0
    %90 = vmatpush1.msra.mxu0 0.0
    %91 = vmatprep.subr.mxu0 0.0
    %92 = vmatpush1.msra.mxu0 0.0
    %93 = vmatprep.subr.mxu0 0.0
    %94 = vmatpush1.msra.mxu0 0.0
    %95 = vmatprep.subr.mxu0 0.0
    %96 = vmatpush1.msra.mxu0 0.0
    %97 = vmatprep.subr.mxu0 0.0
    %98 = vmatpush1.msra.mxu0 0.0
    %99 = vmatprep.subr.mxu0 0.0
    %100 = vmatpush1.msra.mxu0 0.0
    %101 = vmatprep.subr.mxu0 0.0
    %102 = vmatpush1.msra.mxu0 0.0
    %103 = vmatprep.subr.mxu0 0.0
    %104 = vmatpush1.msra.mxu0 0.0
    %105 = vmatprep.subr.mxu0 0.0
    %106 = vmatpush1.msra.mxu0 0.0
    %107 = vmatprep.subr.mxu0 0.0
    %108 = vmatpush1.msra.mxu0 0.0
    %109 = vmatprep.subr.mxu0 0.0
    %110 = vmatpush1.msra.mxu0 0.0
    %111 = vmatprep.subr.mxu0 0.0
    %112 = vmatpush1.msra.mxu0 0.0
    %113 = vmatprep.mubr.f32.mxu0 0.0
    %114 = vmatmul.mubr.f32.gmra.mrb[0].mxu0 %v47
    %v115 = vpop.f32.mrb[0].mxu0
    %v116 = vadd.f32 %v44, %v115
    %v117 = vpop.f32.mrb[0].mxu0
    %118 = vdwg.mxu0
    %vm119 = vcmp.gt.f32.partialorder %v116, 0.0
    %v120 = vmin.f32 %v116, 0.0
    %v121 = vmul.f32 %v120, 1.442695
    %v122 = vpow.pop %v121
    %v123 = vsub.f32 %v122, 1.0
    %v124 = vsel %vm119, %v116, %v123
    %v125 = vld [vmem:[%s2] sm:$0xff]
    %v126 = vld [vmem:[%s2 + $0x8] sm:$0xff]
    %v127 = vld [vmem:[%s2 + $0x10] sm:$0xff]
    %v128 = vld [vmem:[%s2 + $0x18] sm:$0xff]
    %v129 = vld [vmem:[%s2 + $0x20] sm:$0xff]
    %v130 = vld [vmem:[%s2 + $0x28] sm:$0xff]
    %v131 = vld [vmem:[%s2 + $0x30] sm:$0xff]
    %v132 = vld [vmem:[%s2 + $0x38] sm:$0xff]
    %v133 = vlaneseq
    %v134 = vshrl.u32 %v133, 7
    %v135 = vsub.s32 1, %v134
    %v136 = vrot.slane %v35, %v135
    %vm137 = vcmask 523264
    %v139 = vsel %vm137, %v124, 0
    %141 = vmatprep.subr.mxu0 0.0
    %142 = vmatpush1.msra.mxu0 %v125
    %143 = vmatprep.subr.mxu0 0.0
    %144 = vmatpush1.msra.mxu0 %v126
    %145 = vmatprep.subr.mxu0 0.0
    %146 = vmatpush1.msra.mxu0 %v127
    %147 = vmatprep.subr.mxu0 0.0
    %148 = vmatpush1.msra.mxu0 %v128
    %149 = vmatprep.subr.mxu0 0.0
    %150 = vmatpush1.msra.mxu0 %v129
    %151 = vmatprep.subr.mxu0 0.0
    %152 = vmatpush1.msra.mxu0 %v130
    %153 = vmatprep.subr.mxu0 0.0
    %154 = vmatpush1.msra.mxu0 %v131
    %155 = vmatprep.subr.mxu0 0.0
    %156 = vmatpush1.msra.mxu0 %v132
    %157 = vmatprep.subr.mxu0 0.0
    %158 = vmatpush1.msra.mxu0 0.0
    %159 = vmatprep.subr.mxu0 0.0
    %160 = vmatpush1.msra.mxu0 0.0
    %161 = vmatprep.subr.mxu0 0.0
    %162 = vmatpush1.msra.mxu0 0.0
    %163 = vmatprep.subr.mxu0 0.0
    %164 = vmatpush1.msra.mxu0 0.0
    %165 = vmatprep.subr.mxu0 0.0
    %166 = vmatpush1.msra.mxu0 0.0
    %167 = vmatprep.subr.mxu0 0.0
    %168 = vmatpush1.msra.mxu0 0.0
    %169 = vmatprep.subr.mxu0 0.0
    %170 = vmatpush1.msra.mxu0 0.0
    %171 = vmatprep.subr.mxu0 0.0
    %172 = vmatpush1.msra.mxu0 0.0
    %173 = vmatprep.subr.mxu0 0.0
    %174 = vmatpush1.msra.mxu0 0.0
    %175 = vmatprep.subr.mxu0 0.0
    %176 = vmatpush1.msra.mxu0 0.0
    %177 = vmatprep.subr.mxu0 0.0
    %178 = vmatpush1.msra.mxu0 0.0
    %179 = vmatprep.subr.mxu0 0.0
    %180 = vmatpush1.msra.mxu0 0.0
    %181 = vmatprep.subr.mxu0 0.0
    %182 = vmatpush1.msra.mxu0 0.0
    %183 = vmatprep.subr.mxu0 0.0
    %184 = vmatpush1.msra.mxu0 0.0
    %185 = vmatprep.subr.mxu0 0.0
    %186 = vmatpush1.msra.mxu0 0.0
    %187 = vmatprep.subr.mxu0 0.0
    %188 = vmatpush1.msra.mxu0 0.0
    %189 = vmatprep.subr.mxu0 0.0
    %190 = vmatpush1.msra.mxu0 0.0
    %191 = vmatprep.subr.mxu0 0.0
    %192 = vmatpush1.msra.mxu0 0.0
    %193 = vmatprep.subr.mxu0 0.0
    %194 = vmatpush1.msra.mxu0 0.0
    %195 = vmatprep.subr.mxu0 0.0
    %196 = vmatpush1.msra.mxu0 0.0
    %197 = vmatprep.subr.mxu0 0.0
    %198 = vmatpush1.msra.mxu0 0.0
    %199 = vmatprep.subr.mxu0 0.0
    %200 = vmatpush1.msra.mxu0 0.0
    %201 = vmatprep.subr.mxu0 0.0
    %202 = vmatpush1.msra.mxu0 0.0
    %203 = vmatprep.subr.mxu0 0.0
    %204 = vmatpush1.msra.mxu0 0.0
    %205 = vmatprep.mubr.f32.mxu0 0.0
    %206 = vmatmul.mubr.f32.gmra.mrb[0].mxu0 %v139
    %v207 = vpop.f32.mrb[0].mxu0
    %v208 = vadd.f32 %v136, %v207
    %v209 = vpop.f32.mrb[0].mxu0
    %210 = vdwg.mxu0
    %vm211 = vcmp.gt.f32.partialorder %v208, 0.0
    %v212 = vmin.f32 %v208, 0.0
    %v213 = vmul.f32 %v212, 1.442695
    %v214 = vpow.pop %v213
    %v215 = vsub.f32 %v214, 1.0
    %v216 = vsel %vm211, %v208, %v215
    %v217 = vld [vmem:[%s3] sm:$0xff]
    %v218 = vld [vmem:[%s3 + $0x8] sm:$0xff]
    %v219 = vld [vmem:[%s3 + $0x10] sm:$0xff]
    %v220 = vld [vmem:[%s3 + $0x18] sm:$0xff]
    %v221 = vld [vmem:[%s3 + $0x20] sm:$0xff]
    %v222 = vld [vmem:[%s3 + $0x28] sm:$0xff]
    %v223 = vld [vmem:[%s3 + $0x30] sm:$0xff]
    %v224 = vld [vmem:[%s3 + $0x38] sm:$0xff]
    %v225 = vlaneseq
    %v226 = vshrl.u32 %v225, 7
    %v227 = vsub.s32 2, %v226
    %v228 = vrot.slane %v35, %v227
    %v230 = vsel %vm137, %v216, 0
    %232 = vmatprep.subr.mxu0 0.0
    %233 = vmatpush1.msra.mxu0 %v217
    %234 = vmatprep.subr.mxu0 0.0
    %235 = vmatpush1.msra.mxu0 %v218
    %236 = vmatprep.subr.mxu0 0.0
    %237 = vmatpush1.msra.mxu0 %v219
    %238 = vmatprep.subr.mxu0 0.0
    %239 = vmatpush1.msra.mxu0 %v220
    %240 = vmatprep.subr.mxu0 0.0
    %241 = vmatpush1.msra.mxu0 %v221
    %242 = vmatprep.subr.mxu0 0.0
    %243 = vmatpush1.msra.mxu0 %v222
    %244 = vmatprep.subr.mxu0 0.0
    %245 = vmatpush1.msra.mxu0 %v223
    %246 = vmatprep.subr.mxu0 0.0
    %247 = vmatpush1.msra.mxu0 %v224
    %248 = vmatprep.subr.mxu0 0.0
    %249 = vmatpush1.msra.mxu0 0.0
    %250 = vmatprep.subr.mxu0 0.0
    %251 = vmatpush1.msra.mxu0 0.0
    %252 = vmatprep.subr.mxu0 0.0
    %253 = vmatpush1.msra.mxu0 0.0
    %254 = vmatprep.subr.mxu0 0.0
    %255 = vmatpush1.msra.mxu0 0.0
    %256 = vmatprep.subr.mxu0 0.0
    %257 = vmatpush1.msra.mxu0 0.0
    %258 = vmatprep.subr.mxu0 0.0
    %259 = vmatpush1.msra.mxu0 0.0
    %260 = vmatprep.subr.mxu0 0.0
    %261 = vmatpush1.msra.mxu0 0.0
    %262 = vmatprep.subr.mxu0 0.0
    %263 = vmatpush1.msra.mxu0 0.0
    %264 = vmatprep.subr.mxu0 0.0
    %265 = vmatpush1.msra.mxu0 0.0
    %266 = vmatprep.subr.mxu0 0.0
    %267 = vmatpush1.msra.mxu0 0.0
    %268 = vmatprep.subr.mxu0 0.0
    %269 = vmatpush1.msra.mxu0 0.0
    %270 = vmatprep.subr.mxu0 0.0
    %271 = vmatpush1.msra.mxu0 0.0
    %272 = vmatprep.subr.mxu0 0.0
    %273 = vmatpush1.msra.mxu0 0.0
    %274 = vmatprep.subr.mxu0 0.0
    %275 = vmatpush1.msra.mxu0 0.0
    %276 = vmatprep.subr.mxu0 0.0
    %277 = vmatpush1.msra.mxu0 0.0
    %278 = vmatprep.subr.mxu0 0.0
    %279 = vmatpush1.msra.mxu0 0.0
    %280 = vmatprep.subr.mxu0 0.0
    %281 = vmatpush1.msra.mxu0 0.0
    %282 = vmatprep.subr.mxu0 0.0
    %283 = vmatpush1.msra.mxu0 0.0
    %284 = vmatprep.subr.mxu0 0.0
    %285 = vmatpush1.msra.mxu0 0.0
    %286 = vmatprep.subr.mxu0 0.0
    %287 = vmatpush1.msra.mxu0 0.0
    %288 = vmatprep.subr.mxu0 0.0
    %289 = vmatpush1.msra.mxu0 0.0
    %290 = vmatprep.subr.mxu0 0.0
    %291 = vmatpush1.msra.mxu0 0.0
    %292 = vmatprep.subr.mxu0 0.0
    %293 = vmatpush1.msra.mxu0 0.0
    %294 = vmatprep.subr.mxu0 0.0
    %295 = vmatpush1.msra.mxu0 0.0
    %296 = vmatprep.mubr.f32.mxu0 0.0
    %297 = vmatmul.mubr.f32.gmra.mrb[0].mxu0 %v230
    %v298 = vpop.f32.mrb[0].mxu0
    %v299 = vadd.f32 %v228, %v298
    %v300 = vpop.f32.mrb[0].mxu0
    %301 = vdwg.mxu0
    %vm302 = vcmask 64512
    %303 = vst.msk [vmem:[#allocation5] sm:$0xff] %vm302, %v299
    // Predicated region
    $region26: #{tpu_custom_call.1} parent=1 // pred_check
      _
    $region27: #{tpu_custom_call.1} parent=1 // pred_check_branch
      %305 = sbr.rel (0) target = $region29
    $region28: #{tpu_custom_call.1} parent=1 // pred_region
      %s307 = ssub.s32 128, 128
      %308 = vsyncadd [#allocation4], %s307
      %s310 = sshll.u32 [#allocation5], 4
      %s311 = int_to_ptr.vmem [resolvable:$true] %s310
      %313 = dma.vmem_to_hbm [thread:$0]  %s311, 128, %s5, [#allocation4]
    $region29: #{tpu_custom_call.1} parent=1 // pred_fallthru
      _
    // Predicated region
    $region30: #{tpu_custom_call.1} parent=1 // pred_check
      _
    $region31: #{tpu_custom_call.1} parent=1 // pred_check_branch
      %315 = sbr.rel (0) target = $region33
    $region32: #{tpu_custom_call.1} parent=1 // pred_region
      %316 = dma.done [#allocation4], 128
    $region33: #{tpu_custom_call.1} parent=1 // pred_fallthru
      _
    %317 = vsyncpa [#allocation3], 1
    %318 = vsyncpa [#allocation4], 1

</llo_original>
